<compile_context>
chip_gen: v6e
topology: v6e:2x2x1
jax: 0.10.0
libtpu: 0.0.40
codegen_flags: <defaults>
</compile_context>

<pallas_src>
import functools

import jax
import jax.numpy as jnp
from jax.experimental import pallas as pl
from jax.experimental.pallas import tpu as pltpu


# ----------------------------------------------------------------------------
# Generation-aware VMEM budgeting
# ----------------------------------------------------------------------------
@functools.lru_cache(maxsize=None)
def _vmem_budgets():
    """Returns (per-streamed-buffer byte cap, pallas vmem_limit_bytes)."""
    try:
        cap = int(pltpu.get_tpu_info().vmem_capacity_bytes)
    except Exception:
        cap = 64 * 1024 * 1024  # conservative: assume v7x-class 64 MiB VMEM
    if cap >= 100 * 1024 * 1024:
        # v5e / v6e class (128 MiB VMEM): big blocks, raised scoped limit.
        return 8 * 1024 * 1024, 96 * 1024 * 1024
    # v7x class (64 MiB VMEM per TensorCore): tight accounting so
    # 2x double-buffered inputs + weights + tiny scratches stay within 32 MiB.
    return 4 * 1024 * 1024, 32 * 1024 * 1024


# ----------------------------------------------------------------------------
# Tile selection
# ----------------------------------------------------------------------------
def _choose_tiles(B, C, HW, itemsize, budget):
    """Pick (b_tile, c_tile, hw_tile).

    Preference order:
      1. whole C x whole HW block if it fits the per-buffer budget,
      2. keep HW whole, tile C in packed-sublane multiples (preferring a
         divisor of C when it doesn't shrink the block by more than 2x),
      3. only if even `pack` rows of full HW don't fit, tile HW too
         (128-lane multiples, in-kernel tail mask on the last step).
    """
    b_tile = min(B, 8)
    pack = max(8, 32 // itemsize)          # 8 f32 / 16 bf16 / 32 int8
    row_bytes = itemsize * b_tile * HW     # one channel row, full HW
    c_cap = budget // max(1, row_bytes)

    if c_cap >= C:
        return b_tile, C, HW

    if c_cap >= pack:
        best = (c_cap // pack) * pack
        d = best
        while d >= pack:                   # prefer a divisor of C (no tail)
            if C % d == 0:
                break
            d -= pack
        if d >= pack and C % d == 0 and 2 * d >= best:
            return b_tile, d, HW
        return b_tile, best, HW            # masked C tail in-kernel

    # Fallback: tile HW as well.
    c_tile = min(C, pack)
    hw_cap = budget // max(1, itemsize * b_tile * c_tile)
    hw_tile = min(HW, max(128, (hw_cap // 128) * 128))
    return b_tile, c_tile, hw_tile


# ----------------------------------------------------------------------------
# Kernel
# ----------------------------------------------------------------------------
def _stage_kernel(x_ref, w_ref, b_ref, fcw_ref, o_ref, pool_acc, y_acc,
                  *, hw_true, hw_tile, c_true, c_tile, inv_hw):
    """Fused global-avg-pool + Linear + ReLU + fc-slice for one stage.

    Grid: (B tiles ["parallel"], C tiles ["arbitrary"], HW tiles ["arbitrary"]).
      x_ref    : (bt, ct, ht)  native dtype, streamed
      w_ref    : (ct, D)       f32 stage Linear weight (zero-padded C tail)
      b_ref    : (1, D)        f32 stage Linear bias
      fcw_ref  : (1, D)        f32 slice of the final fc weight for this stage
      o_ref    : (bt, 1)       f32 partial output: relu(pool@W + b) . fc_slice
      pool_acc : (bt, ct)      f32 scratch, spatial-sum accumulator
      y_acc    : (bt, D)       f32 scratch, pre-activation accumulated over C
    """
    ci = pl.program_id(1)
    hi = pl.program_id(2)
    n_c = pl.num_programs(1)
    n_h = pl.num_programs(2)

    @pl.when(hi == 0)
    def _():
        pool_acc[...] = jnp.zeros_like(pool_acc)

    x = x_ref[...].astype(jnp.float32)
    hw_rem = hw_true % hw_tile
    if hw_rem == 0:
        # Per-tile XLU lane reduce into tiny scratch (no full-tile f32 RMW).
        pool_acc[...] += jnp.sum(x, axis=-1)
    else:
        # Mask only on the last (partial) HW step; full tiles add unmasked.
        @pl.when(hi < n_h - 1)
        def _():
            pool_acc[...] += jnp.sum(x, axis=-1)

        @pl.when(hi == n_h - 1)
        def _():
            lane = jax.lax.broadcasted_iota(jnp.int32, x.shape, 2)
            xm = jnp.where(lane < hw_rem, x, 0.0)
            pool_acc[...] += jnp.sum(xm, axis=-1)

    @pl.when(hi == n_h - 1)
    def _():
        pooled = pool_acc[...] * inv_hw                           # (bt, ct)
        if c_true % c_tile != 0:
            # Zero out-of-range channels of the last (partial) C tile; the
            # matching weight rows are zero-padded wrapper-side, so the
            # garbage in the streamed tail never reaches the accumulator.
            col = jax.lax.broadcasted_iota(jnp.int32, pooled.shape, 1)
            pooled = jnp.where(ci * c_tile + col < c_true, pooled, 0.0)
        contrib = jnp.dot(pooled, w_ref[...],
                          preferred_element_type=jnp.float32)     # (bt, D)

        @pl.when(ci == 0)
        def _():
            y_acc[...] = jnp.zeros_like(y_acc)

        y_acc[...] += contrib

        @pl.when(ci == n_c - 1)
        def _():
            y = jnp.maximum(y_acc[...] + b_ref[...], 0.0)         # (bt, D)
            # Degenerate N=1 matmul replaced by VPU mul + XLU lane reduce.
            o_ref[...] = jnp.sum(y * fcw_ref[...], axis=-1, keepdims=True)


# ----------------------------------------------------------------------------
# Per-stage wrapper
# ----------------------------------------------------------------------------
def _stage_forward(x_bchw, w, b, fc_w_row, *, per_buf_budget=None,
                   vmem_limit=None):
    """x: (B, C, H, W); w: (C, D); b: (D,); fc_w_row: (1, D) -> (B, 1) f32."""
    if per_buf_budget is None or vmem_limit is None:
        def_budget, def_limit = _vmem_budgets()
        per_buf_budget = per_buf_budget or def_budget
        vmem_limit = vmem_limit or def_limit

    B, C, H, W = x_bchw.shape
    D = w.shape[1]
    HW = H * W
    # Trailing-dim merge: layout-preserving, dtype untouched (bf16 producers
    # stream bf16; the f32 cast happens per-tile in-kernel).
    x = x_bchw.reshape(B, C, HW)

    b_tile, c_tile, hw_tile = _choose_tiles(B, C, HW, x.dtype.itemsize,
                                            per_buf_budget)
    n_b = pl.cdiv(B, b_tile)
    n_c = pl.cdiv(C, c_tile)
    n_hw = pl.cdiv(HW, hw_tile)

    w_f32 = w.astype(jnp.float32)
    c_pad = n_c * c_tile
    if c_pad != C:
        # Tiny wrapper-side pad so the last weight block holds real zeros
        # (stale VMEM in the streamed C tail could otherwise be NaN/Inf).
        w_f32 = jnp.pad(w_f32, ((0, c_pad - C), (0, 0)))

    kernel = functools.partial(
        _stage_kernel, hw_true=HW, hw_tile=hw_tile, c_true=C, c_tile=c_tile,
        inv_hw=1.0 / float(HW))

    return pl.pallas_call(
        kernel,
        out_shape=jax.ShapeDtypeStruct((B, 1), jnp.float32),
        grid_spec=pltpu.PrefetchScalarGridSpec(
            num_scalar_prefetch=0,
            grid=(n_b, n_c, n_hw),
            in_specs=[
                pl.BlockSpec((b_tile, c_tile, hw_tile),
                             lambda bi, ci, hi: (bi, ci, hi)),
                pl.BlockSpec((c_tile, D), lambda bi, ci, hi: (ci, 0)),
                pl.BlockSpec((1, D), lambda bi, ci, hi: (0, 0)),
                pl.BlockSpec((1, D), lambda bi, ci, hi: (0, 0)),
            ],
            out_specs=pl.BlockSpec((b_tile, 1), lambda bi, ci, hi: (bi, 0)),
            scratch_shapes=[
                pltpu.VMEM((b_tile, c_tile), jnp.float32),   # pooled-sum acc
                pltpu.VMEM((b_tile, D), jnp.float32),        # pre-act acc
            ],
        ),
        compiler_params=pltpu.CompilerParams(
            dimension_semantics=("parallel", "arbitrary", "arbitrary"),
            vmem_limit_bytes=vmem_limit,
        ),
    )(x, w_f32, b.reshape(1, D).astype(jnp.float32),
      fc_w_row.reshape(1, D).astype(jnp.float32))


# ----------------------------------------------------------------------------
# LPM module (parameters + forward)
# ----------------------------------------------------------------------------
def init_lpm_params(key, feature_shapes, in_dim):
    """Deterministic parameter init (matching nn.Linear shapes, not values)."""
    params = {"stages": [], "fc": None}
    for shape in feature_shapes:
        c = shape[1]
        key, kw, kb = jax.random.split(key, 3)
        scale = 1.0 / jnp.sqrt(jnp.float32(c))
        w = jax.random.uniform(kw, (c, in_dim), jnp.float32, -scale, scale)
        b = jax.random.uniform(kb, (in_dim,), jnp.float32, -scale, scale)
        params["stages"].append((w, b))
    key, kw, kb = jax.random.split(key, 3)
    fan_in = 4 * in_dim
    scale = 1.0 / jnp.sqrt(jnp.float32(fan_in))
    fc_w = jax.random.uniform(kw, (fan_in, 1), jnp.float32, -scale, scale)
    fc_b = jax.random.uniform(kb, (1,), jnp.float32, -scale, scale)
    params["fc"] = (fc_w, fc_b)
    return params


def lpm_forward(params, xs):
    """xs: list of NCHW feature maps, one per stage -> (B, 1)."""
    fc_w, fc_b = params["fc"]
    D = params["stages"][0][0].shape[1]
    out = None
    for i, ((w, b), x) in enumerate(zip(params["stages"], xs)):
        fc_row = fc_w[i * D:(i + 1) * D, 0].reshape(1, D)
        part = _stage_forward(x, w, b, fc_row)
        out = part if out is None else out + part
    return out + fc_b.reshape(1, 1).astype(jnp.float32)


def lpm_reference(params, xs):
    """Pure-JAX reference for verification."""
    outs = []
    for (w, b), x in zip(params["stages"], xs):
        pooled = jnp.mean(x.astype(jnp.float32), axis=(2, 3))   # (B, C)
        outs.append(jnp.maximum(pooled @ w + b, 0.0))
    cat = jnp.concatenate(outs, axis=1)
    fc_w, fc_b = params["fc"]
    return cat @ fc_w + fc_b


def _stage_reference(x, w, b, fc_row):
    pooled = jnp.mean(x.astype(jnp.float32), axis=(2, 3))
    y = jnp.maximum(pooled @ w + b, 0.0)
    return jnp.sum(y * fc_row, axis=-1, keepdims=True)


# ----------------------------------------------------------------------------
# Main
# ----------------------------------------------------------------------------
if __name__ == "__main__":
    B = 2
    in_dim = 32
    # Small analogues of ResNet-50 stage outputs.
    feature_shapes = [
        (B, 4, 16, 16),
        (B, 8, 24, 24),
        (B, 320, 8, 8),
        (B, 32, 4, 4),
    ]

    key = jax.random.PRNGKey(0)
    key, pkey = jax.random.split(key)
    params = init_lpm_params(pkey, feature_shapes, in_dim)

    xs = []
    for shape in feature_shapes:
        key, sk = jax.random.split(key)
        xs.append(jax.random.normal(sk, shape, jnp.float32))

    out = jax.block_until_ready(lpm_forward(params, xs))
    ref = lpm_reference(params, xs)
    assert out.shape == (B, 1), out.shape
    assert jnp.allclose(out, ref, atol=1e-4, rtol=1e-4), (out, ref)

    # Extra coverage: force the tiled/masked code paths via tiny VMEM budgets
    # (these are the paths large ResNet-50 stage maps would take).
    key, k1, k2, k3 = jax.random.split(key, 4)
    fc_row = jnp.linspace(-0.02, 0.02, in_dim, dtype=jnp.float32).reshape(1, in_dim)
    bias = jnp.linspace(-0.05, 0.05, in_dim, dtype=jnp.float32)

    # (a) C tiling with a masked C tail (C=36 -> c_tile=8, padded weight).
    xc = jax.random.normal(k1, (2, 36, 8, 8), jnp.float32)
    wc = jax.random.uniform(k2, (36, in_dim), jnp.float32, -0.1, 0.1)
    got_c = jax.block_until_ready(
        _stage_forward(xc, wc, bias, fc_row, per_buf_budget=4 * 1024))
    ref_c = _stage_reference(xc, wc, bias, fc_row)
    assert jnp.allclose(got_c, ref_c, atol=1e-4, rtol=1e-4), (got_c, ref_c)

    # (b) HW tiling with a masked HW tail (HW=576 -> 256-lane tiles + tail).
    xh = jax.random.normal(k3, (2, 8, 24, 24), jnp.float32)
    key, k4 = jax.random.split(key)
    wh = jax.random.uniform(k4, (8, in_dim), jnp.float32, -0.1, 0.1)
    got_h = jax.block_until_ready(
        _stage_forward(xh, wh, bias, fc_row, per_buf_budget=16 * 1024))
    ref_h = _stage_reference(xh, wh, bias, fc_row)
    assert jnp.allclose(got_h, ref_h, atol=1e-4, rtol=1e-4), (got_h, ref_h)

    print("KERNEL_OK")
</pallas_src>

<mosaic_0001>
module attributes {stable_mosaic.version = 11 : i64} {
  func.func @_stage_kernel(%arg0: i32, %arg1: i32, %arg2: i32, %arg3: memref<2x4x256xf32, #tpu.memory_space<vmem>>, %arg4: memref<4x32xf32, #tpu.memory_space<vmem>>, %arg5: memref<1x32xf32, #tpu.memory_space<vmem>>, %arg6: memref<1x32xf32, #tpu.memory_space<vmem>>, %arg7: memref<2x1xf32, #tpu.memory_space<vmem>>, %arg8: memref<2x4xf32, #tpu.memory_space<vmem>>, %arg9: memref<2x32xf32, #tpu.memory_space<vmem>>) attributes {dimension_semantics = [#tpu.dimension_semantics<parallel>, #tpu.dimension_semantics<arbitrary>, #tpu.dimension_semantics<arbitrary>], iteration_bounds = array<i64: 1, 1, 1>, scalar_prefetch = 0 : i64, scratch_operands = 2 : i64, tpu.core_type = #tpu.core_type<tc>, window_params = [{transform_indices = @transform_0, window_bounds = array<i64: 2, 4, 256>}, {transform_indices = @transform_1, window_bounds = array<i64: 4, 32>}, {pipeline_mode = #tpu.pipeline_mode<synchronous>, transform_indices = @transform_2, window_bounds = array<i64: 1, 32>}, {pipeline_mode = #tpu.pipeline_mode<synchronous>, transform_indices = @transform_3, window_bounds = array<i64: 1, 32>}, {transform_indices = @transform_4, window_bounds = array<i64: 2, 1>}]} {
    %c0_i32 = arith.constant 0 : i32
    %0 = arith.cmpi eq, %arg2, %c0_i32 : i32
    %1 = arith.extui %0 : i1 to i32
    %c0_i32_0 = arith.constant 0 : i32
    %2 = arith.cmpi ne, %1, %c0_i32_0 : i32
    scf.if %2 {
      %cst_9 = arith.constant 0.000000e+00 : f32
      %11 = vector.broadcast %cst_9 : f32 to vector<2x4xf32>
      %c0_10 = arith.constant 0 : index
      %c0_11 = arith.constant 0 : index
      %12 = vector.load %arg8[%c0_10, %c0_11] : memref<2x4xf32, #tpu.memory_space<vmem>>, vector<2x4xf32>
      tpu.vector_store %arg8[%c0_10, %c0_11], %11 {strides = array<i32>} : memref<2x4xf32, #tpu.memory_space<vmem>>, vector<2x4xf32>,
    } else {
    }
    %c0 = arith.constant 0 : index
    %c0_1 = arith.constant 0 : index
    %c0_2 = arith.constant 0 : index
    %3 = vector.load %arg3[%c0, %c0_1, %c0_2] : memref<2x4x256xf32, #tpu.memory_space<vmem>>, vector<2x4x256xf32>
    %c0_3 = arith.constant 0 : index
    %c0_4 = arith.constant 0 : index
    %4 = vector.load %arg8[%c0_3, %c0_4] : memref<2x4xf32, #tpu.memory_space<vmem>>, vector<2x4xf32>
    %cst = arith.constant dense<0.000000e+00> : vector<2x4xf32>
    %5 = vector.multi_reduction <add>, %3, %cst [2] : vector<2x4x256xf32> to vector<2x4xf32>
    %6 = arith.addf %4, %5 : vector<2x4xf32>
    %c0_5 = arith.constant 0 : index
    %c0_6 = arith.constant 0 : index
    %7 = vector.load %arg8[%c0_5, %c0_6] : memref<2x4xf32, #tpu.memory_space<vmem>>, vector<2x4xf32>
    tpu.vector_store %arg8[%c0_5, %c0_6], %6 {strides = array<i32>} : memref<2x4xf32, #tpu.memory_space<vmem>>, vector<2x4xf32>,
    %c0_i32_7 = arith.constant 0 : i32
    %8 = arith.cmpi eq, %arg2, %c0_i32_7 : i32
    %9 = arith.extui %8 : i1 to i32
    %c0_i32_8 = arith.constant 0 : i32
    %10 = arith.cmpi ne, %9, %c0_i32_8 : i32
    scf.if %10 {
      %c0_9 = arith.constant 0 : index
      %c0_10 = arith.constant 0 : index
      %11 = vector.load %arg8[%c0_9, %c0_10] : memref<2x4xf32, #tpu.memory_space<vmem>>, vector<2x4xf32>
      %cst_11 = arith.constant 3.906250e-03 : f32
      %12 = vector.broadcast %cst_11 : f32 to vector<2x4xf32>
      %13 = arith.mulf %11, %12 : vector<2x4xf32>
      %c0_12 = arith.constant 0 : index
      %c0_13 = arith.constant 0 : index
      %14 = vector.load %arg4[%c0_12, %c0_13] : memref<4x32xf32, #tpu.memory_space<vmem>>, vector<4x32xf32>
      %cst_14 = arith.constant dense<0.000000e+00> : vector<2x32xf32>
      %15 = tpu.matmul %13, %14, %cst_14 {dimension_numbers = #tpu.dot_dimension_numbers<[1], [0], [0], [1], [0, 0, 1, 1], [], []>} : vector<2x4xf32>, vector<4x32xf32>, vector<2x32xf32> -> vector<2x32xf32>
      %c0_i32_15 = arith.constant 0 : i32
      %16 = arith.cmpi eq, %arg1, %c0_i32_15 : i32
      %17 = arith.extui %16 : i1 to i32
      %c0_i32_16 = arith.constant 0 : i32
      %18 = arith.cmpi ne, %17, %c0_i32_16 : i32
      scf.if %18 {
        %cst_23 = arith.constant 0.000000e+00 : f32
        %25 = vector.broadcast %cst_23 : f32 to vector<2x32xf32>
        %c0_24 = arith.constant 0 : index
        %c0_25 = arith.constant 0 : index
        %26 = vector.load %arg9[%c0_24, %c0_25] : memref<2x32xf32, #tpu.memory_space<vmem>>, vector<2x32xf32>
        tpu.vector_store %arg9[%c0_24, %c0_25], %25 {strides = array<i32>} : memref<2x32xf32, #tpu.memory_space<vmem>>, vector<2x32xf32>,
      } else {
      }
      %c0_17 = arith.constant 0 : index
      %c0_18 = arith.constant 0 : index
      %19 = vector.load %arg9[%c0_17, %c0_18] : memref<2x32xf32, #tpu.memory_space<vmem>>, vector<2x32xf32>
      %20 = arith.addf %19, %15 : vector<2x32xf32>
      %c0_19 = arith.constant 0 : index
      %c0_20 = arith.constant 0 : index
      %21 = vector.load %arg9[%c0_19, %c0_20] : memref<2x32xf32, #tpu.memory_space<vmem>>, vector<2x32xf32>
      tpu.vector_store %arg9[%c0_19, %c0_20], %20 {strides = array<i32>} : memref<2x32xf32, #tpu.memory_space<vmem>>, vector<2x32xf32>,
      %c0_i32_21 = arith.constant 0 : i32
      %22 = arith.cmpi eq, %arg1, %c0_i32_21 : i32
      %23 = arith.extui %22 : i1 to i32
      %c0_i32_22 = arith.constant 0 : i32
      %24 = arith.cmpi ne, %23, %c0_i32_22 : i32
      scf.if %24 {
        %c0_23 = arith.constant 0 : index
        %c0_24 = arith.constant 0 : index
        %25 = vector.load %arg9[%c0_23, %c0_24] : memref<2x32xf32, #tpu.memory_space<vmem>>, vector<2x32xf32>
        %c0_25 = arith.constant 0 : index
        %c0_26 = arith.constant 0 : index
        %26 = vector.load %arg5[%c0_25, %c0_26] : memref<1x32xf32, #tpu.memory_space<vmem>>, vector<1x32xf32>
        %27 = vector.broadcast %26 : vector<1x32xf32> to vector<2x32xf32>
        %28 = arith.addf %25, %27 : vector<2x32xf32>
        %cst_27 = arith.constant 0.000000e+00 : f32
        %29 = vector.broadcast %cst_27 : f32 to vector<2x32xf32>
        %30 = arith.maximumf %28, %29 : vector<2x32xf32>
        %c0_28 = arith.constant 0 : index
        %c0_29 = arith.constant 0 : index
        %31 = vector.load %arg6[%c0_28, %c0_29] : memref<1x32xf32, #tpu.memory_space<vmem>>, vector<1x32xf32>
        %32 = vector.broadcast %31 : vector<1x32xf32> to vector<2x32xf32>
        %33 = arith.mulf %30, %32 : vector<2x32xf32>
        %cst_30 = arith.constant dense<0.000000e+00> : vector<2xf32>
        %34 = vector.multi_reduction <add>, %33, %cst_30 [1] : vector<2x32xf32> to vector<2xf32>
        %35 = vector.shape_cast %34 : vector<2xf32> to vector<2x1xf32>
        %c0_31 = arith.constant 0 : index
        %c0_32 = arith.constant 0 : index
        %36 = vector.load %arg7[%c0_31, %c0_32] : memref<2x1xf32, #tpu.memory_space<vmem>>, vector<2x1xf32>
        tpu.vector_store %arg7[%c0_31, %c0_32], %35 {strides = array<i32>} : memref<2x1xf32, #tpu.memory_space<vmem>>, vector<2x1xf32>,
      } else {
      }
    } else {
    }
    return
  }
  func.func @transform_0(%arg0: i32, %arg1: i32, %arg2: i32) -> (i32, i32, i32) {
    %c0_i32 = arith.constant 0 : i32
    return %arg0, %arg1, %arg2 : i32, i32, i32
  }
  func.func @transform_1(%arg0: i32, %arg1: i32, %arg2: i32) -> (i32, i32) {
    %c0_i32 = arith.constant 0 : i32
    %c0_i32_0 = arith.constant 0 : i32
    return %arg1, %c0_i32 : i32, i32
  }
  func.func @transform_2(%arg0: i32, %arg1: i32, %arg2: i32) -> (i32, i32) {
    %c0_i32 = arith.constant 0 : i32
    %c0_i32_0 = arith.constant 0 : i32
    %c0_i32_1 = arith.constant 0 : i32
    return %c0_i32, %c0_i32_0 : i32, i32
  }
  func.func @transform_3(%arg0: i32, %arg1: i32, %arg2: i32) -> (i32, i32) {
    %c0_i32 = arith.constant 0 : i32
    %c0_i32_0 = arith.constant 0 : i32
    %c0_i32_1 = arith.constant 0 : i32
    return %c0_i32, %c0_i32_0 : i32, i32
  }
  func.func @transform_4(%arg0: i32, %arg1: i32, %arg2: i32) -> (i32, i32) {
    %c0_i32 = arith.constant 0 : i32
    %c0_i32_0 = arith.constant 0 : i32
    return %arg0, %c0_i32 : i32, i32
  }
}

</mosaic_0001>

<llo_original>
// kernel: tpu_custom_call.1
$region0: #{tpu_custom_call.1}
  #allocation0 [shape = 'u32[]', space=smem, size = 0x4, offset = 0x4, fixed_abs, tag = 'smem constant byte address 0x4 - core index']
  #allocation1 [shape = 'u32[144,128]{1,0:T(1,128)}', space=vmem, size = 0x12000, scoped, tag = 'internal scratch']
  #allocation2 [shape = 'f32[2,4]{1,0:T(2,128)}', space=vmem, size = 0x400, scoped, tag = 'scratch operand']
  #allocation3 [shape = 'f32[2,32]{1,0:T(2,128)}', space=vmem, size = 0x400, scoped, tag = 'scratch operand']
  %s0 = inlined_call_operand.hbm [shape: f32[2,4,256], index: 0, kind: input, shape index: {}]
  %s1 = inlined_call_operand.hbm [shape: f32[4,32], index: 1, kind: input, shape index: {}]
  %s2 = inlined_call_operand.vmem [shape: f32[1,32], index: 2, kind: input, shape index: {}]
  %s3 = inlined_call_operand.vmem [shape: f32[1,32], index: 3, kind: input, shape index: {}]
  %s4 = inlined_call_operand.vmem [shape: f32[2,1], index: 4, kind: output, shape index: {}]
  %s5 = sld [smem:[#allocation0]]
  $region50: #{tpu_custom_call.1} parent=0
    _
  %s7 = ssub.s32 1, %s5
  %s8 = scalar_select 0, %s7, %s5
  $region1: #{tpu_custom_call.1} parent=0
    #allocation4 [shape = 'u8[8192]{0}', space=vmem, size = 0x2000, scoped, tag = 'input window, operand 0, single buffered']
    #allocation5 [shape = 's32[1]{0}', space=sflag, size = 0x4, scoped, tag = 'scoped memory for tpu_custom_call.1']
    #allocation6 [shape = 'u8[2048]{0}', space=vmem, size = 0x800, scoped, tag = 'input window, operand 1, single buffered']
    #allocation7 [shape = 's32[1]{0}', space=sflag, size = 0x4, scoped, tag = 'scoped memory for tpu_custom_call.1']
    %9 = vsyncpa [#allocation5], 0
    %10 = vsyncpa [#allocation7], 0
    // Predicated region
    $region2: #{tpu_custom_call.1} parent=1 // pred_check
      _
    $region3: #{tpu_custom_call.1} parent=1 // pred_check_branch
      %12 = sbr.rel (0) target = $region5
    $region4: #{tpu_custom_call.1} parent=1 // pred_region
      %s14 = ssub.s32 256, 256
      %15 = vsyncadd [#allocation5], %s14
      %s16 = sshll.u32 [#allocation4], 4
      %s17 = int_to_ptr.vmem [resolvable:$true] %s16
      %22 = dma.hbm_to_vmem [thread:$0]  %s0, 256, %s17, [#allocation5], 128, 128, 8
    $region5: #{tpu_custom_call.1} parent=1 // pred_fallthru
      _
    // Predicated region
    $region6: #{tpu_custom_call.1} parent=1 // pred_check
      _
    $region7: #{tpu_custom_call.1} parent=1 // pred_check_branch
      %24 = sbr.rel (0) target = $region9
    $region8: #{tpu_custom_call.1} parent=1 // pred_region
      %s26 = ssub.s32 64, 64
      %27 = vsyncadd [#allocation7], %s26
      %s29 = sshll.u32 [#allocation6], 4
      %s30 = int_to_ptr.vmem [resolvable:$true] %s29
      %32 = dma.hbm_to_vmem [thread:$0]  %s1, 64, %s30, [#allocation7]
    $region9: #{tpu_custom_call.1} parent=1 // pred_fallthru
      _
    // Predicated region
    $region10: #{tpu_custom_call.1} parent=1 // pred_check
      _
    $region11: #{tpu_custom_call.1} parent=1 // pred_check_branch
      %34 = sbr.rel (0) target = $region13
    $region12: #{tpu_custom_call.1} parent=1 // pred_region
      _
    $region13: #{tpu_custom_call.1} parent=1 // pred_fallthru
      _
    // Predicated region
    $region14: #{tpu_custom_call.1} parent=1 // pred_check
      _
    $region15: #{tpu_custom_call.1} parent=1 // pred_check_branch
      %36 = sbr.rel (0) target = $region17
    $region16: #{tpu_custom_call.1} parent=1 // pred_region
      _
    $region17: #{tpu_custom_call.1} parent=1 // pred_fallthru
      _
    // Predicated region
    $region18: #{tpu_custom_call.1} parent=1 // pred_check
      _
    $region19: #{tpu_custom_call.1} parent=1 // pred_check_branch
      %38 = sbr.rel (0) target = $region21
    $region20: #{tpu_custom_call.1} parent=1 // pred_region
      %39 = dma.done [#allocation5], 256
    $region21: #{tpu_custom_call.1} parent=1 // pred_fallthru
      _
    // Predicated region
    $region22: #{tpu_custom_call.1} parent=1 // pred_check
      _
    $region23: #{tpu_custom_call.1} parent=1 // pred_check_branch
      %41 = sbr.rel (0) target = $region25
    $region24: #{tpu_custom_call.1} parent=1 // pred_region
      %42 = dma.done [#allocation7], 64
    $region25: #{tpu_custom_call.1} parent=1 // pred_fallthru
      _
    %p43 = scmp.eq.s32.totalorder 0, 0
    // Predicated region
    $region26: #{tpu_custom_call.1} parent=1 // pred_check
      %p44 = pneg %p43
    $region27: #{tpu_custom_call.1} parent=1 // pred_check_branch
      %46 = sbr.rel (%p44) target = $region29
    $region28: #{tpu_custom_call.1} parent=1 // pred_region
      %vm47 = vcmask 25600
      %48 = vst.msk [vmem:[#allocation2] sm:$0x3] %vm47, 0.0
    $region29: #{tpu_custom_call.1} parent=1 // pred_fallthru
      _
    %v49 = vld [vmem:[#allocation4] sm:$0xff]
    %v50 = vld [vmem:[#allocation4 + $0x8] sm:$0xff]
    %v51 = vld [vmem:[#allocation2] sm:$0x3]
    %v54 = vcombine.high %v49, %v49
    %v55 = vcombine.high %v50, %v50
    %vm58 = vcmask 1043456
    %v59 = vsel %vm58, %v49, 0.0
    %v60 = vsel %vm58, %v54, 0.0
    %v61 = vadd.f32 %v59, %v60
    %62 = vadd.xlane.f32.xlu0 %v61
    %v63 = vpop.xlane.xlu0 %62
    %v64 = vsel %vm58, %v50, 0.0
    %v65 = vsel %vm58, %v55, 0.0
    %v66 = vadd.f32 %v64, %v65
    %67 = vadd.xlane.f32.xlu0 %v66
    %v68 = vpop.xlane.xlu0 %67
    %v71 = vlaneseq
    %v72 = vand.u32 %v71, 127
    %v73 = vlaneseq
    %v74 = vshrl.u32 %v73, 7
    %v75 = vsub.s32 %v72, %v74
    %v76 = vrot.slane %v63, %v75
    %v77 = vlaneseq
    %v78 = vshrl.u32 %v77, 7
    %v79 = vsub.s32 %v72, %v78
    %v80 = vrot.slane %v68, %v79
    %vm81 = vcmask 1041409
    %v82 = vsel %vm81, %v80, %v76
    %v84 = vadd.f32 %v51, %v82
    %vm85 = vcmask 25600
    %86 = vst.msk [vmem:[#allocation2] sm:$0x3] %vm85, %v84
    // Predicated region
    $region30: #{tpu_custom_call.1} parent=1 // pred_check
      %p87 = pneg %p43
    $region31: #{tpu_custom_call.1} parent=1 // pred_check_branch
      %89 = sbr.rel (%p87) target = $region33
    $region32: #{tpu_custom_call.1} parent=1 // pred_region
      %v90 = vld [vmem:[#allocation2] sm:$0x3]
      %v91 = vmul.f32 %v90, 0.00390625
      %v92 = vld [vmem:[#allocation6] sm:$0xf]
      %vm93 = vcmask 31744
      %v95 = vsel %vm93, %v91, 0
      %v98 = vsel %vm58, %v92, 0
      %100 = vmatprep.subr.mxu0 0.0
      %101 = vmatpush1.msra.mxu0 0.0
      %102 = vmatprep.subr.mxu0 0.0
      %103 = vmatpush1.msra.mxu0 0.0
      %104 = vmatprep.subr.mxu0 0.0
      %105 = vmatpush1.msra.mxu0 0.0
      %106 = vmatprep.subr.mxu0 0.0
      %107 = vmatpush1.msra.mxu0 0.0
      %108 = vmatprep.subr.mxu0 0.0
      %109 = vmatpush1.msra.mxu0 0.0
      %110 = vmatprep.subr.mxu0 0.0
      %111 = vmatpush1.msra.mxu0 0.0
      %112 = vmatprep.subr.mxu0 0.0
      %113 = vmatpush1.msra.mxu0 0.0
      %114 = vmatprep.subr.mxu0 0.0
      %115 = vmatpush1.msra.mxu0 0.0
      %116 = vmatprep.subr.mxu0 0.0
      %117 = vmatpush1.msra.mxu0 0.0
      %118 = vmatprep.subr.mxu0 0.0
      %119 = vmatpush1.msra.mxu0 0.0
      %120 = vmatprep.subr.mxu0 0.0
      %121 = vmatpush1.msra.mxu0 0.0
      %122 = vmatprep.subr.mxu0 0.0
      %123 = vmatpush1.msra.mxu0 0.0
      %124 = vmatprep.subr.mxu0 0.0
      %125 = vmatpush1.msra.mxu0 0.0
      %126 = vmatprep.subr.mxu0 0.0
      %127 = vmatpush1.msra.mxu0 0.0
      %128 = vmatprep.subr.mxu0 0.0
      %129 = vmatpush1.msra.mxu0 0.0
      %130 = vmatprep.subr.mxu0 0.0
      %131 = vmatpush1.msra.mxu0 %v98
      %132 = vmatprep.subr.mxu0 0.0
      %133 = vmatpush2.msra.mxu0 0.0
      %134 = vmatprep.subr.mxu0 0.0
      %135 = vmatpush2.msra.mxu0 0.0
      %136 = vmatprep.subr.mxu0 0.0
      %137 = vmatpush2.msra.mxu0 0.0
      %138 = vmatprep.subr.mxu0 0.0
      %139 = vmatpush2.msra.mxu0 0.0
      %140 = vmatprep.subr.mxu0 0.0
      %141 = vmatpush2.msra.mxu0 0.0
      %142 = vmatprep.subr.mxu0 0.0
      %143 = vmatpush2.msra.mxu0 0.0
      %144 = vmatprep.subr.mxu0 0.0
      %145 = vmatpush2.msra.mxu0 0.0
      %146 = vmatprep.subr.mxu0 0.0
      %147 = vmatpush2.msra.mxu0 0.0
      %148 = vmatprep.subr.mxu0 0.0
      %149 = vmatpush2.msra.mxu0 0.0
      %150 = vmatprep.subr.mxu0 0.0
      %151 = vmatpush2.msra.mxu0 0.0
      %152 = vmatprep.subr.mxu0 0.0
      %153 = vmatpush2.msra.mxu0 0.0
      %154 = vmatprep.subr.mxu0 0.0
      %155 = vmatpush2.msra.mxu0 0.0
      %156 = vmatprep.subr.mxu0 0.0
      %157 = vmatpush2.msra.mxu0 0.0
      %158 = vmatprep.subr.mxu0 0.0
      %159 = vmatpush2.msra.mxu0 0.0
      %160 = vmatprep.subr.mxu0 0.0
      %161 = vmatpush2.msra.mxu0 0.0
      %162 = vmatprep.subr.mxu0 0.0
      %163 = vmatpush2.msra.mxu0 0.0
      %164 = vmatprep.mubr.f32.mxu0 0.0
      %165 = vmatmul.mubr.f32.gmra.mxu0 %v95
      %v166 = vpop.f32.mrf.mxu0
      %v167 = vadd.f32 0.0, %v166
      %v168 = vpop.f32.mrf.mxu0
      %169 = vdwg.mxu0
      %p170 = scmp.eq.s32.totalorder 0, 0
      // Predicated region
      $region34: #{tpu_custom_call.1} parent=32 // pred_check
        %p171 = pneg %p170
      $region35: #{tpu_custom_call.1} parent=32 // pred_check_branch
        %173 = sbr.rel (%p171) target = $region37
      $region36: #{tpu_custom_call.1} parent=32 // pred_region
        %vm174 = vcmask 254976
        %175 = vst.msk [vmem:[#allocation3] sm:$0x3] %vm174, 0.0
      $region37: #{tpu_custom_call.1} parent=32 // pred_fallthru
        _
      %v176 = vld [vmem:[#allocation3] sm:$0x3]
      %v177 = vadd.f32 %v176, %v167
      %vm178 = vcmask 254976
      %179 = vst.msk [vmem:[#allocation3] sm:$0x3] %vm178, %v177
      // Predicated region
      $region38: #{tpu_custom_call.1} parent=32 // pred_check
        %p180 = pneg %p170
      $region39: #{tpu_custom_call.1} parent=32 // pred_check_branch
        %182 = sbr.rel (%p180) target = $region41
      $region40: #{tpu_custom_call.1} parent=32 // pred_region
        %v183 = vld [vmem:[#allocation3] sm:$0x3]
        %v184 = vld [vmem:[%s2] sm:$0x1]
        %v186 = vlaneseq
        %v187 = vshrl.u32 %v186, 7
        %v188 = vsub.s32 0, %v187
        %v189 = vrot.slane %v184, %v188
        %v191 = vadd.f32 %v183, %v189
        %v192 = vmax.f32 %v191, 0.0
        %v193 = vld [vmem:[%s3] sm:$0x1]
        %v195 = vlaneseq
        %v196 = vshrl.u32 %v195, 7
        %v197 = vsub.s32 0, %v196
        %v198 = vrot.slane %v193, %v197
        %v200 = vmul.f32 %v192, %v198
        %v201 = vsel %vm178, %v200, 0.0
        %202 = vadd.xlane.f32.xlu0 %v201
        %v203 = vpop.xlane.xlu0 %202
        %vm204 = vcmask 1024
        %205 = vst.msk [vmem:[%s4] sm:$0x3] %vm204, %v203
      $region41: #{tpu_custom_call.1} parent=32 // pred_fallthru
        _
    $region33: #{tpu_custom_call.1} parent=1 // pred_fallthru
      _
    // Predicated region
    $region42: #{tpu_custom_call.1} parent=1 // pred_check
      _
    $region43: #{tpu_custom_call.1} parent=1 // pred_check_branch
      %207 = sbr.rel (0) target = $region45
    $region44: #{tpu_custom_call.1} parent=1 // pred_region
      _
    $region45: #{tpu_custom_call.1} parent=1 // pred_fallthru
      _
    // Predicated region
    $region46: #{tpu_custom_call.1} parent=1 // pred_check
      _
    $region47: #{tpu_custom_call.1} parent=1 // pred_check_branch
      %209 = sbr.rel (0) target = $region49
    $region48: #{tpu_custom_call.1} parent=1 // pred_region
      _
    $region49: #{tpu_custom_call.1} parent=1 // pred_fallthru
      _
    %210 = vsyncpa [#allocation5], 1
    %211 = vsyncpa [#allocation7], 1

</llo_original>
